<compile_context>
chip_gen: v7x
topology: tpu7x:2x2x1
jax: 0.10.0
libtpu: 0.0.40
codegen_flags: <defaults>
</compile_context>

<pallas_src>
import jax
import jax.numpy as jnp
from jax.experimental import pallas as pl
from jax.experimental.pallas import tpu as pltpu


def _round_up(v, m):
    return ((v + m - 1) // m) * m


def fused_sage_kernel(a_ref, x_ref, ws_ref, wn_ref, b_ref, o_ref):
    """One grid step == one SAGEConv layer. Activation is carried in o_ref."""
    layer = pl.program_id(0)

    # Seed the carried activation from the input features on layer 0.
    @pl.when(layer == 0)
    def _():
        o_ref[...] = x_ref[...]

    h = o_ref[...]                              # (Np, Dp) f32 carried activation
    h_b = h.astype(jnp.bfloat16)                # bf16 operand for the MXU

    # Mean aggregation: adjacency is pre-normalized (A * 1/deg), so a single
    # bf16 MXU pass gives the per-node neighbour mean (f32 accumulation).
    h_neigh = jnp.dot(a_ref[...], h_b, preferred_element_type=jnp.float32)

    # Two accumulating projections (no concat temporary), f32 accumulation.
    out = (
        jnp.dot(h_b, ws_ref[...], preferred_element_type=jnp.float32)
        + jnp.dot(h_neigh.astype(jnp.bfloat16), wn_ref[...],
                  preferred_element_type=jnp.float32)
        + b_ref[...]
    )
    o_ref[...] = out.astype(o_ref.dtype)


@jax.jit
def graph_sage_forward(adj, in_feat, params):
    """Forward pass of the GraphSage stack; prep + kernel all fused under jit."""
    n, d = in_feat.shape
    num_layers = len(params)

    n_pad = max(_round_up(n, 8), 8)         # sublane multiple only (not 128)
    d_pad = max(_round_up(d, 128), 128)     # lane-dense feature / output dim

    # Hoisted, one-time degree normalization (identical every layer).
    adj_f = adj.astype(jnp.float32)
    deg = jnp.sum(adj_f, axis=-1, keepdims=True)
    inv_deg = jnp.where(deg > 0.0, 1.0 / jnp.maximum(deg, 1.0), 0.0)
    a_norm = adj_f * inv_deg

    # Zero-padded operands; adjacency/weights bf16, activations/bias f32.
    a_p = jnp.pad(a_norm, ((0, n_pad - n), (0, n_pad - n))).astype(jnp.bfloat16)
    x_p = jnp.pad(in_feat.astype(jnp.float32), ((0, n_pad - n), (0, d_pad - d)))

    pad_w = ((0, d_pad - d), (0, d_pad - d))
    w_self_stack = jnp.stack(
        [jnp.pad(w_s.astype(jnp.float32), pad_w) for (w_s, _, _) in params]
    ).astype(jnp.bfloat16)                                          # (L, Dp, Dp)
    w_neigh_stack = jnp.stack(
        [jnp.pad(w_n.astype(jnp.float32), pad_w) for (_, w_n, _) in params]
    ).astype(jnp.bfloat16)                                          # (L, Dp, Dp)
    b_stack = jnp.stack(
        [jnp.pad(jnp.reshape(b, (1, -1)).astype(jnp.float32),
                 ((0, 0), (0, d_pad - d))) for (_, _, b) in params]
    )                                                               # (L, 1, Dp)

    # VMEM budget: resident A (bf16) + x (f32) + carried output (f32), plus
    # double-buffered per-layer bf16 weights and f32 bias (conservatively
    # assume the pipeline keeps two buffers of everything).
    resident = 2 * n_pad * n_pad + 4 * n_pad * d_pad + 4 * n_pad * d_pad
    per_layer = 2 * 2 * d_pad * d_pad + 4 * d_pad
    need = 2 * (resident + per_layer)

    vmem_cap = 64 << 20  # conservative default (v7x physical VMEM per core)
    try:
        cap = pltpu.get_tpu_info().vmem_capacity_bytes
        if isinstance(cap, int) and cap > 0:
            vmem_cap = cap
    except Exception:
        pass
    budget = int(0.85 * vmem_cap)
    if need > budget:
        # Fail loudly instead of silently min()-ing the limit down.
        raise ValueError(
            f"GraphSage resident-adjacency kernel needs ~{need} bytes of VMEM "
            f"but the budget is {budget} bytes; use a row/K-tiled per-layer "
            f"variant for graphs this large."
        )
    vmem_limit = min(max(2 * need, 8 << 20), budget)

    out_p = pl.pallas_call(
        fused_sage_kernel,
        out_shape=jax.ShapeDtypeStruct((n_pad, d_pad), jnp.float32),
        grid_spec=pltpu.PrefetchScalarGridSpec(
            num_scalar_prefetch=0,
            grid=(num_layers,),
            in_specs=[
                pl.BlockSpec((n_pad, n_pad), lambda l: (0, 0)),           # A_norm (resident, bf16)
                pl.BlockSpec((n_pad, d_pad), lambda l: (0, 0)),           # in_feat (read on layer 0)
                pl.BlockSpec((None, d_pad, d_pad), lambda l: (l, 0, 0)),  # W_self[l]  (bf16)
                pl.BlockSpec((None, d_pad, d_pad), lambda l: (l, 0, 0)),  # W_neigh[l] (bf16)
                pl.BlockSpec((None, 1, d_pad), lambda l: (l, 0, 0)),      # bias[l]    (f32)
            ],
            out_specs=pl.BlockSpec((n_pad, d_pad), lambda l: (0, 0)),     # carried activation
        ),
        compiler_params=pltpu.CompilerParams(
            dimension_semantics=("arbitrary",),   # output carried across layers
            vmem_limit_bytes=vmem_limit,
        ),
    )(a_p, x_p, w_self_stack, w_neigh_stack, b_stack)

    return out_p[:n, :d]


def init_params(key, d_model, num_layers):
    params = []
    for _ in range(num_layers):
        k1, k2, key = jax.random.split(key, 3)
        scale = 1.0 / jnp.sqrt(jnp.float32(d_model))
        w_self = jax.random.normal(k1, (d_model, d_model), jnp.float32) * scale
        w_neigh = jax.random.normal(k2, (d_model, d_model), jnp.float32) * scale
        bias = jnp.zeros((1, d_model), jnp.float32)
        params.append((w_self, w_neigh, bias))
    return params


def reference_forward(adj, in_feat, params):
    """Pure-JAX f32 reference for the same math (sanity check)."""
    h = in_feat
    for (w_self, w_neigh, bias) in params:
        deg = jnp.sum(adj, axis=-1, keepdims=True)
        inv_deg = jnp.where(deg > 0.0, 1.0 / jnp.maximum(deg, 1.0), 0.0)
        h_neigh = (adj @ h) * inv_deg
        h = h @ w_self + h_neigh @ w_neigh + bias
    return h


if __name__ == "__main__":
    # config: d_model=32, num_graph_layers=2, aggregate_type="mean"; 16-node graph
    d_model = 32
    num_layers = 2
    n_nodes = 16

    key = jax.random.PRNGKey(0)
    k_adj, k_feat, k_params = jax.random.split(key, 3)

    # Random sparse-ish directed graph as a dense 0/1 adjacency (A[i, j]: edge j -> i).
    adj = (jax.random.uniform(k_adj, (n_nodes, n_nodes)) < 0.3).astype(jnp.float32)

    in_feat = jax.random.normal(k_feat, (n_nodes, d_model), jnp.float32)
    params = init_params(k_params, d_model, num_layers)

    out = jax.block_until_ready(graph_sage_forward(adj, in_feat, params))
    ref = jax.block_until_ready(reference_forward(adj, in_feat, params))

    assert out.shape == (n_nodes, d_model)
    # bf16 MXU operands vs f32 reference -> allow ~1e-2-scale relative error.
    assert jnp.allclose(out, ref, atol=5e-2, rtol=5e-2), float(
        jnp.max(jnp.abs(out - ref)))

    print("KERNEL_OK")
</pallas_src>

<mosaic_0001>
module attributes {stable_mosaic.version = 11 : i64} {
  func.func @fused_sage_kernel(%arg0: i32, %arg1: memref<16x16xbf16, #tpu.memory_space<vmem>>, %arg2: memref<16x128xf32, #tpu.memory_space<vmem>>, %arg3: memref<1x128x128xbf16, #tpu.memory_space<vmem>>, %arg4: memref<1x128x128xbf16, #tpu.memory_space<vmem>>, %arg5: memref<1x1x128xf32, #tpu.memory_space<vmem>>, %arg6: memref<16x128xf32, #tpu.memory_space<vmem>>) attributes {dimension_semantics = [#tpu.dimension_semantics<arbitrary>], iteration_bounds = array<i64: 2>, scalar_prefetch = 0 : i64, scratch_operands = 0 : i64, tpu.core_type = #tpu.core_type<tc>, window_params = [{pipeline_mode = #tpu.pipeline_mode<synchronous>, transform_indices = @transform_0, window_bounds = array<i64: 16, 16>}, {pipeline_mode = #tpu.pipeline_mode<synchronous>, transform_indices = @transform_1, window_bounds = array<i64: 16, 128>}, {transform_indices = @transform_2, window_bounds = array<i64: 1, 128, 128>}, {transform_indices = @transform_3, window_bounds = array<i64: 1, 128, 128>}, {transform_indices = @transform_4, window_bounds = array<i64: 1, 1, 128>}, {pipeline_mode = #tpu.pipeline_mode<synchronous>, transform_indices = @transform_5, window_bounds = array<i64: 16, 128>}]} {
    %c0_i32 = arith.constant 0 : i32
    %0 = arith.cmpi eq, %arg0, %c0_i32 : i32
    %1 = arith.extui %0 : i1 to i32
    %c0_i32_0 = arith.constant 0 : i32
    %2 = arith.cmpi ne, %1, %c0_i32_0 : i32
    scf.if %2 {
      %c0_17 = arith.constant 0 : index
      %c0_18 = arith.constant 0 : index
      %20 = vector.load %arg2[%c0_17, %c0_18] : memref<16x128xf32, #tpu.memory_space<vmem>>, vector<16x128xf32>
      %c0_19 = arith.constant 0 : index
      %c0_20 = arith.constant 0 : index
      %21 = vector.load %arg6[%c0_19, %c0_20] : memref<16x128xf32, #tpu.memory_space<vmem>>, vector<16x128xf32>
      tpu.vector_store %arg6[%c0_19, %c0_20], %20 {strides = array<i32>} : memref<16x128xf32, #tpu.memory_space<vmem>>, vector<16x128xf32>,
    } else {
    }
    %c0 = arith.constant 0 : index
    %c0_1 = arith.constant 0 : index
    %3 = vector.load %arg6[%c0, %c0_1] : memref<16x128xf32, #tpu.memory_space<vmem>>, vector<16x128xf32>
    %4 = arith.truncf %3 : vector<16x128xf32> to vector<16x128xbf16>
    %c0_2 = arith.constant 0 : index
    %c0_3 = arith.constant 0 : index
    %5 = vector.load %arg1[%c0_2, %c0_3] : memref<16x16xbf16, #tpu.memory_space<vmem>>, vector<16x16xbf16>
    %cst = arith.constant dense<0.000000e+00> : vector<16x128xf32>
    %6 = tpu.matmul %5, %4, %cst {dimension_numbers = #tpu.dot_dimension_numbers<[1], [0], [0], [1], [0, 0, 1, 1], [], []>} : vector<16x16xbf16>, vector<16x128xbf16>, vector<16x128xf32> -> vector<16x128xf32>
    %c0_4 = arith.constant 0 : index
    %c0_5 = arith.constant 0 : index
    %c0_6 = arith.constant 0 : index
    %7 = vector.load %arg3[%c0_4, %c0_5, %c0_6] : memref<1x128x128xbf16, #tpu.memory_space<vmem>>, vector<1x128x128xbf16>
    %8 = vector.shape_cast %7 : vector<1x128x128xbf16> to vector<128x128xbf16>
    %cst_7 = arith.constant dense<0.000000e+00> : vector<16x128xf32>
    %9 = tpu.matmul %4, %8, %cst_7 {dimension_numbers = #tpu.dot_dimension_numbers<[1], [0], [0], [1], [0, 0, 1, 1], [], []>} : vector<16x128xbf16>, vector<128x128xbf16>, vector<16x128xf32> -> vector<16x128xf32>
    %10 = arith.truncf %6 : vector<16x128xf32> to vector<16x128xbf16>
    %c0_8 = arith.constant 0 : index
    %c0_9 = arith.constant 0 : index
    %c0_10 = arith.constant 0 : index
    %11 = vector.load %arg4[%c0_8, %c0_9, %c0_10] : memref<1x128x128xbf16, #tpu.memory_space<vmem>>, vector<1x128x128xbf16>
    %12 = vector.shape_cast %11 : vector<1x128x128xbf16> to vector<128x128xbf16>
    %cst_11 = arith.constant dense<0.000000e+00> : vector<16x128xf32>
    %13 = tpu.matmul %10, %12, %cst_11 {dimension_numbers = #tpu.dot_dimension_numbers<[1], [0], [0], [1], [0, 0, 1, 1], [], []>} : vector<16x128xbf16>, vector<128x128xbf16>, vector<16x128xf32> -> vector<16x128xf32>
    %14 = arith.addf %9, %13 : vector<16x128xf32>
    %c0_12 = arith.constant 0 : index
    %c0_13 = arith.constant 0 : index
    %c0_14 = arith.constant 0 : index
    %15 = vector.load %arg5[%c0_12, %c0_13, %c0_14] : memref<1x1x128xf32, #tpu.memory_space<vmem>>, vector<1x1x128xf32>
    %16 = vector.shape_cast %15 : vector<1x1x128xf32> to vector<1x128xf32>
    %17 = vector.broadcast %16 : vector<1x128xf32> to vector<16x128xf32>
    %18 = arith.addf %14, %17 : vector<16x128xf32>
    %c0_15 = arith.constant 0 : index
    %c0_16 = arith.constant 0 : index
    %19 = vector.load %arg6[%c0_15, %c0_16] : memref<16x128xf32, #tpu.memory_space<vmem>>, vector<16x128xf32>
    tpu.vector_store %arg6[%c0_15, %c0_16], %18 {strides = array<i32>} : memref<16x128xf32, #tpu.memory_space<vmem>>, vector<16x128xf32>,
    return
  }
  func.func @transform_0(%arg0: i32) -> (i32, i32) {
    %c0_i32 = arith.constant 0 : i32
    %c0_i32_0 = arith.constant 0 : i32
    %c0_i32_1 = arith.constant 0 : i32
    return %c0_i32, %c0_i32_0 : i32, i32
  }
  func.func @transform_1(%arg0: i32) -> (i32, i32) {
    %c0_i32 = arith.constant 0 : i32
    %c0_i32_0 = arith.constant 0 : i32
    %c0_i32_1 = arith.constant 0 : i32
    return %c0_i32, %c0_i32_0 : i32, i32
  }
  func.func @transform_2(%arg0: i32) -> (i32, i32, i32) {
    %c0_i32 = arith.constant 0 : i32
    %c0_i32_0 = arith.constant 0 : i32
    %c0_i32_1 = arith.constant 0 : i32
    return %arg0, %c0_i32, %c0_i32_0 : i32, i32, i32
  }
  func.func @transform_3(%arg0: i32) -> (i32, i32, i32) {
    %c0_i32 = arith.constant 0 : i32
    %c0_i32_0 = arith.constant 0 : i32
    %c0_i32_1 = arith.constant 0 : i32
    return %arg0, %c0_i32, %c0_i32_0 : i32, i32, i32
  }
  func.func @transform_4(%arg0: i32) -> (i32, i32, i32) {
    %c0_i32 = arith.constant 0 : i32
    %c0_i32_0 = arith.constant 0 : i32
    %c0_i32_1 = arith.constant 0 : i32
    return %arg0, %c0_i32, %c0_i32_0 : i32, i32, i32
  }
  func.func @transform_5(%arg0: i32) -> (i32, i32) {
    %c0_i32 = arith.constant 0 : i32
    %c0_i32_0 = arith.constant 0 : i32
    %c0_i32_1 = arith.constant 0 : i32
    return %c0_i32, %c0_i32_0 : i32, i32
  }
}

</mosaic_0001>

<llo_original>
// kernel: graph_sage_forward.1
$region0: #{graph_sage_forward.1}
  #allocation0 [shape = 'u32[]', space=smem, size = 0x4, offset = 0x4, fixed_abs, tag = 'smem constant byte address 0x4 - core index']
  #allocation1 [shape = 'u32[144,128]{1,0:T(1,128)}', space=vmem, size = 0x12000, scoped, tag = 'internal scratch']
  %s0 = inlined_call_operand.vmem [shape: bf16[16,16], index: 0, kind: input, shape index: {}]
  %s1 = inlined_call_operand.vmem [shape: f32[16,128], index: 1, kind: input, shape index: {}]
  %s2 = inlined_call_operand.vmem [shape: bf16[2,128,128], index: 2, kind: input, shape index: {}]
  %s3 = inlined_call_operand.vmem [shape: bf16[2,128,128], index: 3, kind: input, shape index: {}]
  %s4 = inlined_call_operand.vmem [shape: f32[2,1,128], index: 4, kind: input, shape index: {}]
  %s5 = inlined_call_operand.hbm [shape: f32[16,128], index: 5, kind: output, shape index: {}]
  %s6 = sld [smem:[#allocation0]]
  $region57: #{graph_sage_forward.1} parent=0
    _
  %s8 = ssub.s32 1, %s6
  %s9 = scalar_select 0, %s8, %s6
  $region1: #{graph_sage_forward.1} parent=0
    #allocation2 [shape = 'u8[8192]{0}', space=vmem, size = 0x2000, scoped, tag = 'output window, operand 0, single buffered']
    #allocation3 [shape = 's32[2]{0}', space=sflag, size = 0x8, scoped, tag = 'scoped memory for graph_sage_forward.1']
    %10 = vsyncpa [#allocation3], 0
    loop: start=0, step=1, limit=4
    $region2: #{graph_sage_forward.1} parent=1 // loop_pre_header
      _
    $region3: #{graph_sage_forward.1} parent=1 // loop_header
      %s12 = sphi 0, %s16
      %p13 = scmp.ge.s32.totalorder %s12, 4
      %s20 = sphi 0, %s20
      %s22 = sphi 0, %s20
      %s23 = sphi 0, %s22
      %s37 = sphi 0, %s23
      %s41 = sphi 0, %s41
      %s43 = sphi 0, %s41
      %s44 = sphi 0, %s43
      %s58 = sphi 0, %s44
      %s64 = sphi 0, %s66
      %s67 = sphi 0, %s64
      %s68 = sphi 0, %s67
      %s84 = sphi 0, %s68
      %s90 = sphi 0, %s92
      %s93 = sphi 0, %s90
      %s94 = sphi 0, %s93
      %s110 = sphi 0, %s94
      %s116 = sphi 0, %s118
      %s119 = sphi 0, %s116
      %s120 = sphi 0, %s119
      %s136 = sphi 0, %s120
      %s140 = sphi 0, %s140
      %s142 = sphi 0, %s140
      %s143 = sphi 0, %s142
      %s157 = sphi 0, %s143
    $region4: #{graph_sage_forward.1} parent=1 // loop_header_branch
      %15 = sbr.rel (%p13) target = $region8
    $region5: #{graph_sage_forward.1} parent=1 // loop_body
      %s17 = ssub.s32 %s12, 1
      %s18 = ssub.s32 %s12, 2
      %s19 = sadd.s32 %s12, 1
      %s21 = sadd.s32 %s20, 1
      %p24 = scmp.eq.s32.totalorder %s12, 1
      %p25 = scmp.ne.s32.totalorder %s20, %s22
      %p26 = scmp.eq.s32.totalorder %s12, 0
      %p27 = por %p25, %p26
      %p28 = scmp.ne.s32.totalorder %s20, %s22
      %p29 = scmp.eq.s32.totalorder %s17, 1
      %p30 = por %p28, %p29
      %p31 = scmp.ne.s32.totalorder %s22, %s23
      %p32 = scmp.eq.s32.totalorder %s17, 0
      %p33 = por %p31, %p32
      %p34 = scmp.ne.s32.totalorder %s22, %s23
      %p35 = scmp.eq.s32.totalorder %s18, 1
      %p36 = por %p34, %p35
      %p38 = scmp.ne.s32.totalorder %s23, %s37
      %p39 = scmp.eq.s32.totalorder %s18, 0
      %p40 = por %p38, %p39
      %s42 = sadd.s32 %s41, 1
      %p45 = scmp.eq.s32.totalorder %s12, 1
      %p46 = scmp.ne.s32.totalorder %s41, %s43
      %p47 = scmp.eq.s32.totalorder %s12, 0
      %p48 = por %p46, %p47
      %p49 = scmp.ne.s32.totalorder %s41, %s43
      %p50 = scmp.eq.s32.totalorder %s17, 1
      %p51 = por %p49, %p50
      %p52 = scmp.ne.s32.totalorder %s43, %s44
      %p53 = scmp.eq.s32.totalorder %s17, 0
      %p54 = por %p52, %p53
      %p55 = scmp.ne.s32.totalorder %s43, %s44
      %p56 = scmp.eq.s32.totalorder %s18, 1
      %p57 = por %p55, %p56
      %p59 = scmp.ne.s32.totalorder %s44, %s58
      %p60 = scmp.eq.s32.totalorder %s18, 0
      %p61 = por %p59, %p60
      %s62 = ssub.s32 %s12, %s19
      %p63 = scmp.eq.s32.totalorder %s62, 0
      %s65 = sadd.s32 %s64, 1
      %s66 = scalar_select %p63, %s64, %s65
      %p69 = pneg %p63
      %p70 = scmp.eq.s32.totalorder %s12, 1
      %p71 = por %p69, %p70
      %p72 = scmp.ne.s32.totalorder %s64, %s67
      %p73 = scmp.eq.s32.totalorder %s12, 0
      %p74 = por %p72, %p73
      %p75 = scmp.ne.s32.totalorder %s64, %s67
      %p76 = scmp.eq.s32.totalorder %s17, 1
      %p77 = por %p75, %p76
      %p78 = scmp.ne.s32.totalorder %s67, %s68
      %p79 = scmp.eq.s32.totalorder %s17, 0
      %p80 = por %p78, %p79
      %p81 = scmp.ne.s32.totalorder %s67, %s68
      %p82 = scmp.eq.s32.totalorder %s18, 1
      %p83 = por %p81, %p82
      %p85 = scmp.ne.s32.totalorder %s68, %s84
      %p86 = scmp.eq.s32.totalorder %s18, 0
      %p87 = por %p85, %p86
      %s88 = ssub.s32 %s12, %s19
      %p89 = scmp.eq.s32.totalorder %s88, 0
      %s91 = sadd.s32 %s90, 1
      %s92 = scalar_select %p89, %s90, %s91
      %p95 = pneg %p89
      %p96 = scmp.eq.s32.totalorder %s12, 1
      %p97 = por %p95, %p96
      %p98 = scmp.ne.s32.totalorder %s90, %s93
      %p99 = scmp.eq.s32.totalorder %s12, 0
      %p100 = por %p98, %p99
      %p101 = scmp.ne.s32.totalorder %s90, %s93
      %p102 = scmp.eq.s32.totalorder %s17, 1
      %p103 = por %p101, %p102
      %p104 = scmp.ne.s32.totalorder %s93, %s94
      %p105 = scmp.eq.s32.totalorder %s17, 0
      %p106 = por %p104, %p105
      %p107 = scmp.ne.s32.totalorder %s93, %s94
      %p108 = scmp.eq.s32.totalorder %s18, 1
      %p109 = por %p107, %p108
      %p111 = scmp.ne.s32.totalorder %s94, %s110
      %p112 = scmp.eq.s32.totalorder %s18, 0
      %p113 = por %p111, %p112
      %s114 = ssub.s32 %s12, %s19
      %p115 = scmp.eq.s32.totalorder %s114, 0
      %s117 = sadd.s32 %s116, 1
      %s118 = scalar_select %p115, %s116, %s117
      %p121 = pneg %p115
      %p122 = scmp.eq.s32.totalorder %s12, 1
      %p123 = por %p121, %p122
      %p124 = scmp.ne.s32.totalorder %s116, %s119
      %p125 = scmp.eq.s32.totalorder %s12, 0
      %p126 = por %p124, %p125
      %p127 = scmp.ne.s32.totalorder %s116, %s119
      %p128 = scmp.eq.s32.totalorder %s17, 1
      %p129 = por %p127, %p128
      %p130 = scmp.ne.s32.totalorder %s119, %s120
      %p131 = scmp.eq.s32.totalorder %s17, 0
      %p132 = por %p130, %p131
      %p133 = scmp.ne.s32.totalorder %s119, %s120
      %p134 = scmp.eq.s32.totalorder %s18, 1
      %p135 = por %p133, %p134
      %p137 = scmp.ne.s32.totalorder %s120, %s136
      %p138 = scmp.eq.s32.totalorder %s18, 0
      %p139 = por %p137, %p138
      %s141 = sadd.s32 %s140, 1
      %p144 = scmp.eq.s32.totalorder %s12, 1
      %p145 = scmp.ne.s32.totalorder %s140, %s142
      %p146 = scmp.eq.s32.totalorder %s12, 0
      %p147 = por %p145, %p146
      %p148 = scmp.ne.s32.totalorder %s140, %s142
      %p149 = scmp.eq.s32.totalorder %s17, 1
      %p150 = por %p148, %p149
      %p151 = scmp.ne.s32.totalorder %s142, %s143
      %p152 = scmp.eq.s32.totalorder %s17, 0
      %p153 = por %p151, %p152
      %p154 = scmp.ne.s32.totalorder %s142, %s143
      %p155 = scmp.eq.s32.totalorder %s18, 1
      %p156 = por %p154, %p155
      %p158 = scmp.ne.s32.totalorder %s143, %s157
      %p159 = scmp.eq.s32.totalorder %s18, 0
      %p160 = por %p158, %p159
      %p161 = scmp.le.s32.totalorder 1, %s12
      %p162 = scmp.lt.s32.totalorder %s12, 3
      %p163 = pnand %p161, %p162
      %p164 = pneg %p163
      // Predicated region
      $region9: #{graph_sage_forward.1} parent=5 // pred_check
        _
      $region10: #{graph_sage_forward.1} parent=5 // pred_check_branch
        %166 = sbr.rel (%p163) target = $region12
      $region11: #{graph_sage_forward.1} parent=5 // pred_region
        %s167 = ssub.s32 %s12, 1
        // Predicated region
        $region13: #{graph_sage_forward.1} parent=11 // pred_check
          %p168 = pneg %p33
        $region14: #{graph_sage_forward.1} parent=11 // pred_check_branch
          %170 = sbr.rel (%p168) target = $region16
        $region15: #{graph_sage_forward.1} parent=11 // pred_region
          _
        $region16: #{graph_sage_forward.1} parent=11 // pred_fallthru
          _
        // Predicated region
        $region17: #{graph_sage_forward.1} parent=11 // pred_check
          %p171 = pneg %p54
        $region18: #{graph_sage_forward.1} parent=11 // pred_check_branch
          %173 = sbr.rel (%p171) target = $region20
        $region19: #{graph_sage_forward.1} parent=11 // pred_region
          _
        $region20: #{graph_sage_forward.1} parent=11 // pred_fallthru
          _
      $region12: #{graph_sage_forward.1} parent=5 // pred_fallthru
        _
      %p174 = scmp.lt.s32.totalorder %s12, 2
      // Predicated region
      $region21: #{graph_sage_forward.1} parent=5 // pred_check
        %p175 = pneg %p174
      $region22: #{graph_sage_forward.1} parent=5 // pred_check_branch
        %177 = sbr.rel (%p175) target = $region24
      $region23: #{graph_sage_forward.1} parent=5 // pred_region
        // Predicated region
        $region25: #{graph_sage_forward.1} parent=23 // pred_check
          %p178 = pneg %p74
        $region26: #{graph_sage_forward.1} parent=23 // pred_check_branch
          %180 = sbr.rel (%p178) target = $region28
        $region27: #{graph_sage_forward.1} parent=23 // pred_region
          %p181 = scmp.lt.s32.totalorder %s12, 1
          %s182 = scalar_select %p181, %s12, 1
          %s183 = smul.addr %s182, 16
          %s184 = smul.addr %s183, 4
          %s185 = scalar_lea.vmem %s2, %s184
        $region28: #{graph_sage_forward.1} parent=23 // pred_fallthru
          _
        // Predicated region
        $region29: #{graph_sage_forward.1} parent=23 // pred_check
          %p186 = pneg %p100
        $region30: #{graph_sage_forward.1} parent=23 // pred_check_branch
          %188 = sbr.rel (%p186) target = $region32
        $region31: #{graph_sage_forward.1} parent=23 // pred_region
          %p189 = scmp.lt.s32.totalorder %s12, 1
          %s190 = scalar_select %p189, %s12, 1
          %s191 = smul.addr %s190, 16
          %s192 = smul.addr %s191, 4
          %s193 = scalar_lea.vmem %s3, %s192
        $region32: #{graph_sage_forward.1} parent=23 // pred_fallthru
          _
        // Predicated region
        $region33: #{graph_sage_forward.1} parent=23 // pred_check
          %p194 = pneg %p126
        $region34: #{graph_sage_forward.1} parent=23 // pred_check_branch
          %196 = sbr.rel (%p194) target = $region36
        $region35: #{graph_sage_forward.1} parent=23 // pred_region
          %p197 = scmp.lt.s32.totalorder %s12, 1
          %s198 = scalar_select %p197, %s12, 1
          %s199 = scalar_lea.vmem %s4, %s198
        $region36: #{graph_sage_forward.1} parent=23 // pred_fallthru
          _
      $region24: #{graph_sage_forward.1} parent=5 // pred_fallthru
        _
      %p200 = scmp.le.s32.totalorder 1, %s12
      %p201 = scmp.lt.s32.totalorder %s12, 3
      %p202 = pnand %p200, %p201
      %p203 = pneg %p202
      // Predicated region
      $region37: #{graph_sage_forward.1} parent=5 // pred_check
        _
      $region38: #{graph_sage_forward.1} parent=5 // pred_check_branch
        %205 = sbr.rel (%p202) target = $region40
      $region39: #{graph_sage_forward.1} parent=5 // pred_region
        %s206 = ssub.s32 %s12, 1
        %p207 = pneg %p33
        %p208 = pneg %p30
        %p209 = pneg %p54
        %p210 = pneg %p51
        %p211 = scmp.lt.s32.totalorder %s17, 1
        %s212 = scalar_select %p211, %s17, 1
        %s213 = smul.addr %s212, 16
        %s214 = smul.addr %s213, 4
        %s215 = scalar_lea.vmem %s2, %s214
        %p216 = pneg %p80
        %p217 = pneg %p77
        %p218 = scmp.lt.s32.totalorder %s17, 1
        %s219 = scalar_select %p218, %s17, 1
        %s220 = smul.addr %s219, 16
        %s221 = smul.addr %s220, 4
        %s222 = scalar_lea.vmem %s3, %s221
        %p223 = pneg %p106
        %p224 = pneg %p103
        %p225 = scmp.lt.s32.totalorder %s17, 1
        %s226 = scalar_select %p225, %s17, 1
        %s227 = scalar_lea.vmem %s4, %s226
        %p228 = pneg %p132
        %p229 = pneg %p129
        %p230 = pneg %p153
        %p231 = pneg %p150
        %p232 = scmp.lt.s32.totalorder %s17, 1
        %s233 = scalar_select %p232, %s17, 1
        %s234 = smul.addr %s233, 16
        %s235 = smul.addr %s234, 4
        %s236 = scalar_lea.vmem %s2, %s235
        %p237 = scmp.lt.s32.totalorder %s17, 1
        %s238 = scalar_select %p237, %s17, 1
        %s239 = smul.addr %s238, 16
        %s240 = smul.addr %s239, 4
        %s241 = scalar_lea.vmem %s3, %s240
        %p242 = scmp.lt.s32.totalorder %s17, 1
        %s243 = scalar_select %p242, %s17, 1
        %s244 = scalar_lea.vmem %s4, %s243
        %p246 = scmp.eq.s32.totalorder %s17, 0
        // Predicated region
        $region41: #{graph_sage_forward.1} parent=39 // pred_check
          %p247 = pneg %p246
        $region42: #{graph_sage_forward.1} parent=39 // pred_check_branch
          %249 = sbr.rel (%p247) target = $region44
        $region43: #{graph_sage_forward.1} parent=39 // pred_region
          %v250 = vld [vmem:[%s1] sm:$0xff]
          %v251 = vld [vmem:[%s1 + $0x8] sm:$0xff]
          %252 = vst [vmem:[#allocation2] sm:$0xff] %v250
          %253 = vst [vmem:[#allocation2 + $0x8] sm:$0xff] %v251
        $region44: #{graph_sage_forward.1} parent=39 // pred_fallthru
          _
        %v254 = vld [vmem:[#allocation2] sm:$0xff]
        %v255 = vld [vmem:[#allocation2 + $0x8] sm:$0xff]
        %v256 = vpack.c.bf16 %v255, %v254
        %v257 = vld [vmem:[%s0] sm:$0xf]
        %v258 = vld [vmem:[%s0 + $0x4] sm:$0xf]
        %v261 = vunpack.c.l.b16 %v257
        %v262 = vunpack.c.l.b16 %v258
        %v263 = vpack.c.b16 %v262, %v261
        %vm264 = vcmask 130048
        %v266 = vsel %vm264, %v263, 0
        %268 = vmatprep.subr.bf16.mxu0 0
        %269 = vmatpush1.bf16.msra.mxu0 %v256
        %270 = vmatprep.subr.bf16.mxu0 0
        %271 = vmatpush1.bf16.msra.mxu0 0
        %272 = vmatprep.subr.bf16.mxu0 0
        %273 = vmatpush1.bf16.msra.mxu0 0
        %274 = vmatprep.subr.bf16.mxu0 0
        %275 = vmatpush1.bf16.msra.mxu0 0
        %276 = vmatprep.subr.bf16.mxu0 0
        %277 = vmatpush1.bf16.msra.mxu0 0
        %278 = vmatprep.subr.bf16.mxu0 0
        %279 = vmatpush1.bf16.msra.mxu0 0
        %280 = vmatprep.subr.bf16.mxu0 0
        %281 = vmatpush1.bf16.msra.mxu0 0
        %282 = vmatprep.subr.bf16.mxu0 0
        %283 = vmatpush1.bf16.msra.mxu0 0
        %284 = vmatprep.subr.bf16.mxu0 0
        %285 = vmatpush1.bf16.msra.mxu0 0
        %286 = vmatprep.subr.bf16.mxu0 0
        %287 = vmatpush1.bf16.msra.mxu0 0
        %288 = vmatprep.subr.bf16.mxu0 0
        %289 = vmatpush1.bf16.msra.mxu0 0
        %290 = vmatprep.subr.bf16.mxu0 0
        %291 = vmatpush1.bf16.msra.mxu0 0
        %292 = vmatprep.subr.bf16.mxu0 0
        %293 = vmatpush1.bf16.msra.mxu0 0
        %294 = vmatprep.subr.bf16.mxu0 0
        %295 = vmatpush1.bf16.msra.mxu0 0
        %296 = vmatprep.subr.bf16.mxu0 0
        %297 = vmatpush1.bf16.msra.mxu0 0
        %298 = vmatprep.subr.bf16.mxu0 0
        %299 = vmatpush1.bf16.msra.mxu0 0
        %300 = vmatprep.mubr.bf16.mxu0 0
        %301 = vmatmul.mubr.bf16.gmra.mrb[0].mxu0 %v266
        %v302 = vpop.f32.mrb[0].mxu0
        %v303 = vadd.f32 0.0, %v302
        %v304 = vpop.f32.mrb[0].mxu0
        %v305 = vpop.f32.mrb[0].mxu0
        %v306 = vadd.f32 0.0, %v305
        %v307 = vpop.f32.mrb[0].mxu0
        %308 = vdwg.mxu0
        %v309 = vld [vmem:[%s236] sm:$0xf]
        %v310 = vld [vmem:[%s236 + $0x4] sm:$0xf]
        %v311 = vld [vmem:[%s236 + $0x8] sm:$0xf]
        %v312 = vld [vmem:[%s236 + $0xc] sm:$0xf]
        %v313 = vld [vmem:[%s236 + $0x10] sm:$0xf]
        %v314 = vld [vmem:[%s236 + $0x14] sm:$0xf]
        %v315 = vld [vmem:[%s236 + $0x18] sm:$0xf]
        %v316 = vld [vmem:[%s236 + $0x1c] sm:$0xf]
        %v317 = vld [vmem:[%s236 + $0x20] sm:$0xf]
        %v318 = vld [vmem:[%s236 + $0x24] sm:$0xf]
        %v319 = vld [vmem:[%s236 + $0x28] sm:$0xf]
        %v320 = vld [vmem:[%s236 + $0x2c] sm:$0xf]
        %v321 = vld [vmem:[%s236 + $0x30] sm:$0xf]
        %v322 = vld [vmem:[%s236 + $0x34] sm:$0xf]
        %v323 = vld [vmem:[%s236 + $0x38] sm:$0xf]
        %v324 = vld [vmem:[%s236 + $0x3c] sm:$0xf]
        %v325 = vpack.c.bf16 %v306, %v303
        %v326 = vld [vmem:[%s241] sm:$0xf]
        %v327 = vld [vmem:[%s241 + $0x4] sm:$0xf]
        %v328 = vld [vmem:[%s241 + $0x8] sm:$0xf]
        %v329 = vld [vmem:[%s241 + $0xc] sm:$0xf]
        %v330 = vld [vmem:[%s241 + $0x10] sm:$0xf]
        %v331 = vld [vmem:[%s241 + $0x14] sm:$0xf]
        %v332 = vld [vmem:[%s241 + $0x18] sm:$0xf]
        %v333 = vld [vmem:[%s241 + $0x1c] sm:$0xf]
        %v334 = vld [vmem:[%s241 + $0x20] sm:$0xf]
        %v335 = vld [vmem:[%s241 + $0x24] sm:$0xf]
        %v336 = vld [vmem:[%s241 + $0x28] sm:$0xf]
        %v337 = vld [vmem:[%s241 + $0x2c] sm:$0xf]
        %v338 = vld [vmem:[%s241 + $0x30] sm:$0xf]
        %v339 = vld [vmem:[%s241 + $0x34] sm:$0xf]
        %v340 = vld [vmem:[%s241 + $0x38] sm:$0xf]
        %v341 = vld [vmem:[%s241 + $0x3c] sm:$0xf]
        %v358 = vunpack.c.l.b16 %v326
        %v359 = vunpack.c.l.b16 %v327
        %v360 = vunpack.c.l.b16 %v328
        %v361 = vunpack.c.l.b16 %v329
        %v362 = vunpack.c.l.b16 %v330
        %v363 = vunpack.c.l.b16 %v331
        %v364 = vunpack.c.l.b16 %v332
        %v365 = vunpack.c.l.b16 %v333
        %v366 = vunpack.c.l.b16 %v334
        %v367 = vunpack.c.l.b16 %v335
        %v368 = vunpack.c.l.b16 %v336
        %v369 = vunpack.c.l.b16 %v337
        %v370 = vunpack.c.l.b16 %v338
        %v371 = vunpack.c.l.b16 %v339
        %v372 = vunpack.c.l.b16 %v340
        %v373 = vunpack.c.l.b16 %v341
        %v374 = vpack.c.b16 %v359, %v358
        %v375 = vpack.c.b16 %v361, %v360
        %v376 = vpack.c.b16 %v363, %v362
        %v377 = vpack.c.b16 %v365, %v364
        %v378 = vpack.c.b16 %v367, %v366
        %v379 = vpack.c.b16 %v369, %v368
        %v380 = vpack.c.b16 %v371, %v370
        %v381 = vpack.c.b16 %v373, %v372
        %390 = vmatprep.subr.bf16.mxu0 0
        %391 = vmatpush1.bf16.msra.mxu0 %v374
        %392 = vmatprep.subr.bf16.mxu0 0
        %393 = vmatpush1.bf16.msra.mxu0 %v375
        %394 = vmatprep.subr.bf16.mxu0 0
        %395 = vmatpush1.bf16.msra.mxu0 %v376
        %396 = vmatprep.subr.bf16.mxu0 0
        %397 = vmatpush1.bf16.msra.mxu0 %v377
        %398 = vmatprep.subr.bf16.mxu0 0
        %399 = vmatpush1.bf16.msra.mxu0 %v378
        %400 = vmatprep.subr.bf16.mxu0 0
        %401 = vmatpush1.bf16.msra.mxu0 %v379
        %402 = vmatprep.subr.bf16.mxu0 0
        %403 = vmatpush1.bf16.msra.mxu0 %v380
        %404 = vmatprep.subr.bf16.mxu0 0
        %405 = vmatpush1.bf16.msra.mxu0 %v381
        %406 = vmatprep.subr.bf16.mxu0 0
        %407 = vmatpush1.bf16.msra.mxu0 0
        %408 = vmatprep.subr.bf16.mxu0 0
        %409 = vmatpush1.bf16.msra.mxu0 0
        %410 = vmatprep.subr.bf16.mxu0 0
        %411 = vmatpush1.bf16.msra.mxu0 0
        %412 = vmatprep.subr.bf16.mxu0 0
        %413 = vmatpush1.bf16.msra.mxu0 0
        %414 = vmatprep.subr.bf16.mxu0 0
        %415 = vmatpush1.bf16.msra.mxu0 0
        %416 = vmatprep.subr.bf16.mxu0 0
        %417 = vmatpush1.bf16.msra.mxu0 0
        %418 = vmatprep.subr.bf16.mxu0 0
        %419 = vmatpush1.bf16.msra.mxu0 0
        %420 = vmatprep.subr.bf16.mxu0 0
        %421 = vmatpush1.bf16.msra.mxu0 0
        %422 = vmatprep.mubr.bf16.mxu0 0
        %423 = vmatmul.mubr.bf16.gmra.mrb[0].mxu0 %v325
        %v424 = vpop.f32.mrb[0].mxu0
        %v425 = vadd.f32 0.0, %v424
        %v426 = vpop.f32.mrb[0].mxu0
        %v427 = vpop.f32.mrb[0].mxu0
        %v428 = vadd.f32 0.0, %v427
        %v429 = vpop.f32.mrb[0].mxu0
        %430 = vdwg.mxu0
        %v447 = vunpack.c.l.b16 %v309
        %v448 = vunpack.c.l.b16 %v310
        %v449 = vunpack.c.l.b16 %v311
        %v450 = vunpack.c.l.b16 %v312
        %v451 = vunpack.c.l.b16 %v313
        %v452 = vunpack.c.l.b16 %v314
        %v453 = vunpack.c.l.b16 %v315
        %v454 = vunpack.c.l.b16 %v316
        %v455 = vunpack.c.l.b16 %v317
        %v456 = vunpack.c.l.b16 %v318
        %v457 = vunpack.c.l.b16 %v319
        %v458 = vunpack.c.l.b16 %v320
        %v459 = vunpack.c.l.b16 %v321
        %v460 = vunpack.c.l.b16 %v322
        %v461 = vunpack.c.l.b16 %v323
        %v462 = vunpack.c.l.b16 %v324
        %v463 = vpack.c.b16 %v448, %v447
        %v464 = vpack.c.b16 %v450, %v449
        %v465 = vpack.c.b16 %v452, %v451
        %v466 = vpack.c.b16 %v454, %v453
        %v467 = vpack.c.b16 %v456, %v455
        %v468 = vpack.c.b16 %v458, %v457
        %v469 = vpack.c.b16 %v460, %v459
        %v470 = vpack.c.b16 %v462, %v461
        %479 = vmatprep.subr.bf16.mxu0 0
        %480 = vmatpush1.bf16.msra.mxu0 %v463
        %481 = vmatprep.subr.bf16.mxu0 0
        %482 = vmatpush1.bf16.msra.mxu0 %v464
        %483 = vmatprep.subr.bf16.mxu0 0
        %484 = vmatpush1.bf16.msra.mxu0 %v465
        %485 = vmatprep.subr.bf16.mxu0 0
        %486 = vmatpush1.bf16.msra.mxu0 %v466
        %487 = vmatprep.subr.bf16.mxu0 0
        %488 = vmatpush1.bf16.msra.mxu0 %v467
        %489 = vmatprep.subr.bf16.mxu0 0
        %490 = vmatpush1.bf16.msra.mxu0 %v468
        %491 = vmatprep.subr.bf16.mxu0 0
        %492 = vmatpush1.bf16.msra.mxu0 %v469
        %493 = vmatprep.subr.bf16.mxu0 0
        %494 = vmatpush1.bf16.msra.mxu0 %v470
        %495 = vmatprep.subr.bf16.mxu0 0
        %496 = vmatpush1.bf16.msra.mxu0 0
        %497 = vmatprep.subr.bf16.mxu0 0
        %498 = vmatpush1.bf16.msra.mxu0 0
        %499 = vmatprep.subr.bf16.mxu0 0
        %500 = vmatpush1.bf16.msra.mxu0 0
        %501 = vmatprep.subr.bf16.mxu0 0
        %502 = vmatpush1.bf16.msra.mxu0 0
        %503 = vmatprep.subr.bf16.mxu0 0
        %504 = vmatpush1.bf16.msra.mxu0 0
        %505 = vmatprep.subr.bf16.mxu0 0
        %506 = vmatpush1.bf16.msra.mxu0 0
        %507 = vmatprep.subr.bf16.mxu0 0
        %508 = vmatpush1.bf16.msra.mxu0 0
        %509 = vmatprep.subr.bf16.mxu0 0
        %510 = vmatpush1.bf16.msra.mxu0 0
        %511 = vmatprep.mubr.bf16.mxu0 0
        %512 = vmatmul.mubr.bf16.gmra.mrb[0].mxu0 %v256
        %v513 = vpop.f32.mrb[0].mxu0
        %v514 = vadd.f32 %v425, %v513
        %v515 = vpop.f32.mrb[0].mxu0
        %v516 = vpop.f32.mrb[0].mxu0
        %v517 = vadd.f32 %v428, %v516
        %v518 = vpop.f32.mrb[0].mxu0
        %519 = vdwg.mxu0
        %v520 = vld [vmem:[%s244] sm:$0x1]
        %v522 = vlaneseq
        %v523 = vshrl.u32 %v522, 7
        %v524 = vsub.s32 0, %v523
        %v525 = vrot.slane %v520, %v524
        %v527 = vadd.f32 %v514, %v525
        %v528 = vadd.f32 %v517, %v525
        %529 = vst [vmem:[#allocation2] sm:$0xff] %v527
        %530 = vst [vmem:[#allocation2 + $0x8] sm:$0xff] %v528
        // Predicated region
        $region45: #{graph_sage_forward.1} parent=39 // pred_check
          %p531 = pneg %p150
        $region46: #{graph_sage_forward.1} parent=39 // pred_check_branch
          %533 = sbr.rel (%p531) target = $region48
        $region47: #{graph_sage_forward.1} parent=39 // pred_region
          %s535 = ssub.s32 256, 256
          %536 = vsyncadd [#allocation3], %s535
          %s537 = sshll.u32 [#allocation2], 4
          %s538 = int_to_ptr.vmem [resolvable:$true] %s537
          %543 = dma.vmem_to_hbm [thread:$0]  %s538, 256, %s5, [#allocation3], 128, 128, 8
        $region48: #{graph_sage_forward.1} parent=39 // pred_fallthru
          _
        // Predicated region
        $region49: #{graph_sage_forward.1} parent=39 // pred_check
          %p544 = pneg %p150
        $region50: #{graph_sage_forward.1} parent=39 // pred_check_branch
          %546 = sbr.rel (%p544) target = $region52
        $region51: #{graph_sage_forward.1} parent=39 // pred_region
          %547 = dma.done [#allocation3], 256
        $region52: #{graph_sage_forward.1} parent=39 // pred_fallthru
          _
      $region40: #{graph_sage_forward.1} parent=5 // pred_fallthru
        _
      %p548 = scmp.le.s32.totalorder 2, %s12
      // Predicated region
      $region53: #{graph_sage_forward.1} parent=5 // pred_check
        %p549 = pneg %p548
      $region54: #{graph_sage_forward.1} parent=5 // pred_check_branch
        %551 = sbr.rel (%p549) target = $region56
      $region55: #{graph_sage_forward.1} parent=5 // pred_region
        %s552 = ssub.s32 %s12, 2
      $region56: #{graph_sage_forward.1} parent=5 // pred_fallthru
        _
    $region6: #{graph_sage_forward.1} parent=1 // loop_footer
      %s16 = sadd.s32 1, %s12
    $region7: #{graph_sage_forward.1} parent=1 // loop_footer_branch
      %11 = sbr.rel target = $region3
    $region8: #{graph_sage_forward.1} parent=1 // loop_exit
      _
    %553 = vsyncpa [#allocation3], 1
    %s554 = scalar_lea.sflag [#allocation3], 1
    %555 = vsyncpa %s554, 1

</llo_original>
